<compile_context>
chip_gen: v5e
topology: v5e:2x2
jax: 0.10.0
libtpu: 0.0.40
codegen_flags: <defaults>
</compile_context>

<pallas_src>
import functools
import math

import numpy as np
import jax
import jax.numpy as jnp
from jax import lax
from jax.experimental import pallas as pl
from jax.experimental.pallas import tpu as pltpu

EPS = 1e-5


# --------------------------------------------------------------------------
# Kernels
# --------------------------------------------------------------------------
def _unpacked_kernel(gamma_ref, beta_ref, x_ref, o_ref, *, h, eps):
    """One row == one normalization group (W == H)."""
    x = x_ref[...].astype(jnp.float32)
    mean = jnp.sum(x, axis=-1, keepdims=True) * (1.0 / h)
    d = x - mean
    ssq = jnp.sum(d * d, axis=-1, keepdims=True)
    # torch.var default is unbiased (N-1); h == 1 yields NaN, mirroring torch.
    inv_nm1 = (1.0 / (h - 1)) if h > 1 else float("nan")
    inv = lax.rsqrt(ssq * inv_nm1 + eps)
    o_ref[...] = (d * (gamma_ref[0] * inv) + beta_ref[0]).astype(o_ref.dtype)


def _packed_kernel(gamma_ref, beta_ref, x_ref, seg_ref, o_ref, *, h, eps,
                   split_passes):
    """k length-h groups packed along the 128-lane axis (W = k*h, W % 128 == 0).

    seg_ref is a (W, W) bf16 block-diagonal 0/1 matrix (hoisted out of the
    kernel, resident in VMEM): x @ seg reduces over each segment and
    re-broadcasts the result across it in one lane-dense MXU op.
    """
    x = x_ref[...].astype(jnp.float32)
    seg = seg_ref[...]

    def segsum(v):
        # Exact-split bf16 matmul: seg is exactly 0/1 in bf16; v is split into
        # a bf16 "hi" part plus a bf16 residual, so two bf16 passes recover
        # (near-)f32 accuracy at a fraction of the HIGHEST-precision cost.
        hi = v.astype(jnp.bfloat16)
        s = jnp.dot(hi, seg, preferred_element_type=jnp.float32)
        if split_passes == 2:
            lo = (v - hi.astype(jnp.float32)).astype(jnp.bfloat16)
            s = s + jnp.dot(lo, seg, preferred_element_type=jnp.float32)
        return s

    mean = segsum(x) * (1.0 / h)
    d = x - mean
    ssq = segsum(d * d)
    inv_nm1 = (1.0 / (h - 1)) if h > 1 else float("nan")   # torch.var: unbiased
    inv = lax.rsqrt(ssq * inv_nm1 + eps)
    o_ref[...] = (d * (gamma_ref[0] * inv) + beta_ref[0]).astype(o_ref.dtype)


# --------------------------------------------------------------------------
# Host-side sizing helpers
# --------------------------------------------------------------------------
def _cdiv(a, b):
    return -(-a // b)


def _vmem_capacity_bytes():
    try:
        return int(pltpu.get_tpu_info().vmem_capacity_bytes)
    except Exception:
        return 64 << 20          # conservative: v7x per-TensorCore VMEM


def _packing_factor(h, rows):
    """Smallest k with (k*h) % 128 == 0, rows % k == 0 and k*h not too large."""
    if h >= 128 and h % 128 == 0:
        return 1
    k = 128 // math.gcd(h, 128)
    if k > 1 and k * h <= 512 and rows % k == 0:
        return k
    return 1                      # fallback: unpacked (may use masked stores)


def _pick_row_tile(n_rows, width, itemsize, vmem_cap):
    """Largest sublane-aligned row tile fitting a VMEM-derived byte budget."""
    sublane = {4: 8, 2: 16, 1: 32}.get(itemsize, 8)

    budget = int(0.60 * vmem_cap)
    # Footprint per x-block: 2x double-buffered in + 2x out, plus ~6 f32-sized
    # kernel temporaries (x_f32, d, d*d, bf16 hi/lo, output staging).
    mult = 4.0 + 6.0 * (4.0 / itemsize)
    target = int(min(8 << 20, budget / mult))      # ~4 MiB (v7x) .. 8 MiB (v5e/v6e)
    target = max(target, 1 << 20)

    rt = max(1, target // (width * itemsize))
    rt = max(sublane, (rt // sublane) * sublane)

    total_bytes = n_rows * width * itemsize
    if total_bytes > (4 << 20):
        # Keep >= 4 evenly sized grid steps on non-trivial inputs so the
        # "parallel" row axis can shard across v7x's two TensorCores and the
        # DMA pipeline has work to overlap.
        quarter = _cdiv(_cdiv(n_rows, 4), sublane) * sublane
        rt = min(rt, max(quarter, sublane))

    if rt >= n_rows:
        return n_rows, 1          # full-extent block: always layout-legal
    return rt, _cdiv(n_rows, rt)


# --------------------------------------------------------------------------
# Public wrapper
# --------------------------------------------------------------------------
def layernorm(x, gamma, beta, *, eps=EPS):
    """x: (..., H). gamma, beta: shape-(1,) scalar parameters (as in the module)."""
    orig_shape = x.shape
    H = int(orig_shape[-1])
    R = int(math.prod(orig_shape[:-1])) if len(orig_shape) > 1 else 1

    itemsize = jnp.dtype(x.dtype).itemsize
    k = _packing_factor(H, R)
    W = k * H
    R2 = R // k
    x2 = x.reshape(R2, W)         # row-major: zero-copy lane packing

    vmem_cap = _vmem_capacity_bytes()
    row_tile, n_steps = _pick_row_tile(R2, W, itemsize, vmem_cap)

    block_bytes = row_tile * W * itemsize
    f32_block = row_tile * W * 4
    vmem_needed = 4 * block_bytes + 6 * f32_block + (W * W * 2 if k > 1 else 0)
    vmem_limit = int(min(int(0.85 * vmem_cap),
                         max(32 << 20, int(1.3 * vmem_needed))))

    g = jnp.asarray(gamma, dtype=jnp.float32).reshape(1)
    b = jnp.asarray(beta, dtype=jnp.float32).reshape(1)

    smem = pltpu.MemorySpace.SMEM
    x_spec = pl.BlockSpec((row_tile, W), lambda i: (i, 0))
    o_spec = pl.BlockSpec((row_tile, W), lambda i: (i, 0))

    if k > 1:
        # Block-diagonal segment matrix, built once on host, resident in VMEM
        # (constant index_map -> DMA'd a single time, never rebuilt per step).
        lane = np.arange(W) // H
        seg = jnp.asarray(lane[:, None] == lane[None, :], dtype=jnp.bfloat16)
        split_passes = 1 if jnp.dtype(x.dtype) == jnp.dtype(jnp.bfloat16) else 2
        kernel = functools.partial(_packed_kernel, h=H, eps=float(eps),
                                   split_passes=split_passes)
        in_specs = [
            pl.BlockSpec(memory_space=smem),                 # gamma (scalar path)
            pl.BlockSpec(memory_space=smem),                 # beta  (scalar path)
            x_spec,                                          # x rows
            pl.BlockSpec((W, W), lambda i: (0, 0)),          # seg (resident)
        ]
        args = (g, b, x2, seg)
    else:
        kernel = functools.partial(_unpacked_kernel, h=H, eps=float(eps))
        in_specs = [
            pl.BlockSpec(memory_space=smem),
            pl.BlockSpec(memory_space=smem),
            x_spec,
        ]
        args = (g, b, x2)

    out = pl.pallas_call(
        kernel,
        out_shape=jax.ShapeDtypeStruct((R2, W), x.dtype),
        grid_spec=pltpu.PrefetchScalarGridSpec(
            num_scalar_prefetch=0,
            grid=(n_steps,),
            in_specs=in_specs,
            out_specs=o_spec,
        ),
        compiler_params=pltpu.CompilerParams(
            dimension_semantics=("parallel",),   # shards rows across v7x's 2 TCs
            vmem_limit_bytes=vmem_limit,
        ),
    )(*args)

    return out.reshape(orig_shape)


# --------------------------------------------------------------------------
# Reference & self-test
# --------------------------------------------------------------------------
def _reference(x, gamma, beta, *, eps=EPS):
    x32 = x.astype(jnp.float32)
    mean = jnp.mean(x32, axis=-1, keepdims=True)
    d = x32 - mean
    var = jnp.sum(d * d, axis=-1, keepdims=True) / (x.shape[-1] - 1)  # unbiased (torch.var)
    y = d * gamma.reshape(()) / jnp.sqrt(var + eps) + beta.reshape(())
    return y.astype(x.dtype)


if __name__ == "__main__":
    key = jax.random.PRNGKey(0)
    # Small shape consistent with the module: (batch=2, seq=16, hidden=32).
    x = jax.random.normal(key, (2, 16, 32), dtype=jnp.float32)

    # nn.Parameter(torch.ones(1)) for both gamma and beta.
    gamma = jnp.ones((1,), dtype=jnp.float32)
    beta = jnp.ones((1,), dtype=jnp.float32)

    out = jax.block_until_ready(layernorm(x, gamma, beta))
    ref = _reference(x, gamma, beta)
    assert out.shape == x.shape and out.dtype == x.dtype
    assert jnp.allclose(out, ref, atol=1e-4, rtol=1e-4), "packed-path mismatch vs reference"

    # Also exercise the unpacked (H % 128 == 0) path.
    x_big = jax.random.normal(jax.random.PRNGKey(1), (4, 8, 256), dtype=jnp.float32)
    out_big = jax.block_until_ready(layernorm(x_big, gamma, beta))
    ref_big = _reference(x_big, gamma, beta)
    assert jnp.allclose(out_big, ref_big, atol=1e-5, rtol=1e-5), "unpacked-path mismatch vs reference"

    print("KERNEL_OK")
</pallas_src>

<mosaic_0001>
module attributes {stable_mosaic.version = 11 : i64} {
  func.func @_packed_kernel(%arg0: i32, %arg1: memref<1xf32, #tpu.memory_space<smem>>, %arg2: memref<1xf32, #tpu.memory_space<smem>>, %arg3: memref<8x128xf32, #tpu.memory_space<vmem>>, %arg4: memref<128x128xbf16, #tpu.memory_space<vmem>>, %arg5: memref<8x128xf32, #tpu.memory_space<vmem>>) attributes {dimension_semantics = [#tpu.dimension_semantics<parallel>], iteration_bounds = array<i64: 1>, scalar_prefetch = 0 : i64, scratch_operands = 0 : i64, tpu.core_type = #tpu.core_type<tc>, window_params = [{transform_indices = @transform_0, window_bounds = array<i64: 1>}, {transform_indices = @transform_1, window_bounds = array<i64: 1>}, {transform_indices = @transform_2, window_bounds = array<i64: 8, 128>}, {pipeline_mode = #tpu.pipeline_mode<synchronous>, transform_indices = @transform_3, window_bounds = array<i64: 128, 128>}, {transform_indices = @transform_4, window_bounds = array<i64: 8, 128>}]} {
    %c0 = arith.constant 0 : index
    %c0_0 = arith.constant 0 : index
    %0 = vector.load %arg3[%c0, %c0_0] : memref<8x128xf32, #tpu.memory_space<vmem>>, vector<8x128xf32>
    %c0_1 = arith.constant 0 : index
    %c0_2 = arith.constant 0 : index
    %1 = vector.load %arg4[%c0_1, %c0_2] : memref<128x128xbf16, #tpu.memory_space<vmem>>, vector<128x128xbf16>
    %2 = arith.truncf %0 : vector<8x128xf32> to vector<8x128xbf16>
    %cst = arith.constant dense<0.000000e+00> : vector<8x128xf32>
    %3 = tpu.matmul %2, %1, %cst {dimension_numbers = #tpu.dot_dimension_numbers<[1], [0], [0], [1], [0, 0, 1, 1], [], []>} : vector<8x128xbf16>, vector<128x128xbf16>, vector<8x128xf32> -> vector<8x128xf32>
    %4 = arith.extf %2 : vector<8x128xbf16> to vector<8x128xf32>
    %5 = arith.subf %0, %4 : vector<8x128xf32>
    %6 = arith.truncf %5 : vector<8x128xf32> to vector<8x128xbf16>
    %cst_3 = arith.constant dense<0.000000e+00> : vector<8x128xf32>
    %7 = tpu.matmul %6, %1, %cst_3 {dimension_numbers = #tpu.dot_dimension_numbers<[1], [0], [0], [1], [0, 0, 1, 1], [], []>} : vector<8x128xbf16>, vector<128x128xbf16>, vector<8x128xf32> -> vector<8x128xf32>
    %8 = arith.addf %3, %7 : vector<8x128xf32>
    %cst_4 = arith.constant 3.125000e-02 : f32
    %9 = vector.broadcast %cst_4 : f32 to vector<8x128xf32>
    %10 = arith.mulf %8, %9 : vector<8x128xf32>
    %11 = arith.subf %0, %10 : vector<8x128xf32>
    %12 = arith.mulf %11, %11 : vector<8x128xf32>
    %13 = arith.truncf %12 : vector<8x128xf32> to vector<8x128xbf16>
    %cst_5 = arith.constant dense<0.000000e+00> : vector<8x128xf32>
    %14 = tpu.matmul %13, %1, %cst_5 {dimension_numbers = #tpu.dot_dimension_numbers<[1], [0], [0], [1], [0, 0, 1, 1], [], []>} : vector<8x128xbf16>, vector<128x128xbf16>, vector<8x128xf32> -> vector<8x128xf32>
    %15 = arith.extf %13 : vector<8x128xbf16> to vector<8x128xf32>
    %16 = arith.subf %12, %15 : vector<8x128xf32>
    %17 = arith.truncf %16 : vector<8x128xf32> to vector<8x128xbf16>
    %cst_6 = arith.constant dense<0.000000e+00> : vector<8x128xf32>
    %18 = tpu.matmul %17, %1, %cst_6 {dimension_numbers = #tpu.dot_dimension_numbers<[1], [0], [0], [1], [0, 0, 1, 1], [], []>} : vector<8x128xbf16>, vector<128x128xbf16>, vector<8x128xf32> -> vector<8x128xf32>
    %19 = arith.addf %14, %18 : vector<8x128xf32>
    %cst_7 = arith.constant 0.0322580636 : f32
    %20 = vector.broadcast %cst_7 : f32 to vector<8x128xf32>
    %21 = arith.mulf %19, %20 : vector<8x128xf32>
    %cst_8 = arith.constant 9.99999974E-6 : f32
    %22 = vector.broadcast %cst_8 : f32 to vector<8x128xf32>
    %23 = arith.addf %21, %22 : vector<8x128xf32>
    %24 = math.rsqrt %23 : vector<8x128xf32>
    %c0_9 = arith.constant 0 : index
    %25 = memref.load %arg1[%c0_9] : memref<1xf32, #tpu.memory_space<smem>>
    %26 = vector.broadcast %25 : f32 to vector<8x128xf32>
    %27 = arith.mulf %26, %24 : vector<8x128xf32>
    %28 = arith.mulf %11, %27 : vector<8x128xf32>
    %c0_10 = arith.constant 0 : index
    %29 = memref.load %arg2[%c0_10] : memref<1xf32, #tpu.memory_space<smem>>
    %30 = vector.broadcast %29 : f32 to vector<8x128xf32>
    %31 = arith.addf %28, %30 : vector<8x128xf32>
    %c0_11 = arith.constant 0 : index
    %c0_12 = arith.constant 0 : index
    %32 = vector.load %arg5[%c0_11, %c0_12] : memref<8x128xf32, #tpu.memory_space<vmem>>, vector<8x128xf32>
    tpu.vector_store %arg5[%c0_11, %c0_12], %31 {strides = array<i32>} : memref<8x128xf32, #tpu.memory_space<vmem>>, vector<8x128xf32>,
    return
  }
  func.func @transform_0(%arg0: i32) -> i32 {
    %c0_i32 = arith.constant 0 : i32
    %c0_i32_0 = arith.constant 0 : i32
    return %c0_i32 : i32
  }
  func.func @transform_1(%arg0: i32) -> i32 {
    %c0_i32 = arith.constant 0 : i32
    %c0_i32_0 = arith.constant 0 : i32
    return %c0_i32 : i32
  }
  func.func @transform_2(%arg0: i32) -> (i32, i32) {
    %c0_i32 = arith.constant 0 : i32
    %c0_i32_0 = arith.constant 0 : i32
    return %arg0, %c0_i32 : i32, i32
  }
  func.func @transform_3(%arg0: i32) -> (i32, i32) {
    %c0_i32 = arith.constant 0 : i32
    %c0_i32_0 = arith.constant 0 : i32
    %c0_i32_1 = arith.constant 0 : i32
    return %c0_i32, %c0_i32_0 : i32, i32
  }
  func.func @transform_4(%arg0: i32) -> (i32, i32) {
    %c0_i32 = arith.constant 0 : i32
    %c0_i32_0 = arith.constant 0 : i32
    return %arg0, %c0_i32 : i32, i32
  }
}

</mosaic_0001>

<llo_original>
// kernel: tpu_custom_call.1
$region0: #{tpu_custom_call.1}
  #allocation0 [shape = 'u32[]', space=smem, size = 0x4, offset = 0x4, fixed_abs, tag = 'smem constant byte address 0x4 - core index']
  #allocation1 [shape = 'u32[72,128]{1,0:T(1,128)}', space=vmem, size = 0x9000, scoped, tag = 'internal scratch']
  #allocation2 [shape = 'f32[1]{0:T(128)S(6)}', space=smem, size = 0x200, scoped, tag = 'scoped memory for tpu_custom_call.1']
  #allocation3 [shape = 'f32[1]{0:T(128)S(6)}', space=smem, size = 0x200, scoped, tag = 'scoped memory for tpu_custom_call.1']
  %s0 = inlined_call_operand.<no memory space> [shape: f32[1], index: 0, kind: input, shape index: {}]
  %s1 = inlined_call_operand.<no memory space> [shape: f32[1], index: 1, kind: input, shape index: {}]
  %s2 = inlined_call_operand.hbm [shape: f32[8,128], index: 2, kind: input, shape index: {}]
  %s3 = inlined_call_operand.hbm [shape: bf16[128,128], index: 3, kind: input, shape index: {}]
  %s4 = inlined_call_operand.hbm [shape: f32[8,128], index: 4, kind: output, shape index: {}]
  %s5 = sld [smem:[#allocation0]]
  $region34: #{tpu_custom_call.1} parent=0
    _
  %s7 = ssub.s32 1, %s5
  %s8 = scalar_select 0, %s7, %s5
  %9 = sst [smem:[#allocation2]] %s0
  %10 = sst [smem:[#allocation3]] %s1
  $region1: #{tpu_custom_call.1} parent=0
    #allocation4 [shape = 'u8[4096]{0}', space=vmem, size = 0x1000, scoped, tag = 'input window, operand 2, single buffered']
    #allocation5 [shape = 's32[1]{0}', space=sflag, size = 0x4, scoped, tag = 'scoped memory for tpu_custom_call.1']
    #allocation6 [shape = 's32[1]{0}', space=sflag, size = 0x4, scoped, tag = 'scoped memory for tpu_custom_call.1']
    #allocation7 [shape = 'u8[32768]{0}', space=vmem, size = 0x8000, scoped, tag = 'input window, operand 3, single buffered']
    #allocation8 [shape = 's32[1]{0}', space=sflag, size = 0x4, scoped, tag = 'scoped memory for tpu_custom_call.1']
    #allocation9 [shape = 'u8[4096]{0}', space=vmem, size = 0x1000, scoped, tag = 'output window, operand 0, single buffered']
    %11 = vsyncpa [#allocation5], 0
    %12 = vsyncpa [#allocation8], 0
    %13 = vsyncpa [#allocation6], 0
    // Predicated region
    $region2: #{tpu_custom_call.1} parent=1 // pred_check
      _
    $region3: #{tpu_custom_call.1} parent=1 // pred_check_branch
      %15 = sbr.rel (0) target = $region5
    $region4: #{tpu_custom_call.1} parent=1 // pred_region
      _
    $region5: #{tpu_custom_call.1} parent=1 // pred_fallthru
      _
    // Predicated region
    $region6: #{tpu_custom_call.1} parent=1 // pred_check
      _
    $region7: #{tpu_custom_call.1} parent=1 // pred_check_branch
      %17 = sbr.rel (0) target = $region9
    $region8: #{tpu_custom_call.1} parent=1 // pred_region
      _
    $region9: #{tpu_custom_call.1} parent=1 // pred_fallthru
      _
    // Predicated region
    $region10: #{tpu_custom_call.1} parent=1 // pred_check
      _
    $region11: #{tpu_custom_call.1} parent=1 // pred_check_branch
      %19 = sbr.rel (0) target = $region13
    $region12: #{tpu_custom_call.1} parent=1 // pred_region
      %21 = vsyncadd [#allocation5], 0
      %s23 = sshll.u32 %s2, 4
      %s24 = int_to_ptr.hbm [resolvable:$true] %s23
      %s25 = sshll.u32 [#allocation4], 4
      %s26 = int_to_ptr.vmem [resolvable:$true] %s25
      %28 = dma.hbm_to_vmem [thread:$0]  %s24, 128, %s26, [#allocation5]
    $region13: #{tpu_custom_call.1} parent=1 // pred_fallthru
      _
    // Predicated region
    $region14: #{tpu_custom_call.1} parent=1 // pred_check
      _
    $region15: #{tpu_custom_call.1} parent=1 // pred_check_branch
      %30 = sbr.rel (0) target = $region17
    $region16: #{tpu_custom_call.1} parent=1 // pred_region
      %32 = vsyncadd [#allocation8], 0
      %s33 = sshll.u32 %s3, 4
      %s34 = int_to_ptr.hbm [resolvable:$true] %s33
      %s35 = sshll.u32 [#allocation7], 4
      %s36 = int_to_ptr.vmem [resolvable:$true] %s35
      %41 = dma.hbm_to_vmem [thread:$0]  %s34, 1024, %s36, [#allocation8], 64, 64, 4
    $region17: #{tpu_custom_call.1} parent=1 // pred_fallthru
      _
    // Predicated region
    $region18: #{tpu_custom_call.1} parent=1 // pred_check
      _
    $region19: #{tpu_custom_call.1} parent=1 // pred_check_branch
      %43 = sbr.rel (0) target = $region21
    $region20: #{tpu_custom_call.1} parent=1 // pred_region
      %45 = dma.done [#allocation5], 128
    $region21: #{tpu_custom_call.1} parent=1 // pred_fallthru
      _
    // Predicated region
    $region22: #{tpu_custom_call.1} parent=1 // pred_check
      _
    $region23: #{tpu_custom_call.1} parent=1 // pred_check_branch
      %47 = sbr.rel (0) target = $region25
    $region24: #{tpu_custom_call.1} parent=1 // pred_region
      %49 = dma.done [#allocation8], 1024
    $region25: #{tpu_custom_call.1} parent=1 // pred_fallthru
      _
    %v50 = vld [vmem:[#allocation4] sm:$0xff]
    %v51 = vld [vmem:[#allocation7] sm:$0xf]
    %v52 = vld [vmem:[#allocation7 + $0x4] sm:$0xf]
    %v53 = vld [vmem:[#allocation7 + $0x8] sm:$0xf]
    %v54 = vld [vmem:[#allocation7 + $0xc] sm:$0xf]
    %v55 = vld [vmem:[#allocation7 + $0x10] sm:$0xf]
    %v56 = vld [vmem:[#allocation7 + $0x14] sm:$0xf]
    %v57 = vld [vmem:[#allocation7 + $0x18] sm:$0xf]
    %v58 = vld [vmem:[#allocation7 + $0x1c] sm:$0xf]
    %v59 = vld [vmem:[#allocation7 + $0x20] sm:$0xf]
    %v60 = vld [vmem:[#allocation7 + $0x24] sm:$0xf]
    %v61 = vld [vmem:[#allocation7 + $0x28] sm:$0xf]
    %v62 = vld [vmem:[#allocation7 + $0x2c] sm:$0xf]
    %v63 = vld [vmem:[#allocation7 + $0x30] sm:$0xf]
    %v64 = vld [vmem:[#allocation7 + $0x34] sm:$0xf]
    %v65 = vld [vmem:[#allocation7 + $0x38] sm:$0xf]
    %v66 = vld [vmem:[#allocation7 + $0x3c] sm:$0xf]
    %v67 = vpack.c.bf16 %v50, %v50
    %v68 = vunpack.c.l.bf16 %v67
    %v69 = vsub.f32 %v50, %v68
    %v70 = vpack.c.bf16 %v69, %v69
    %v87 = vunpack.c.l.b16 %v51
    %v88 = vunpack.c.l.b16 %v52
    %v89 = vunpack.c.l.b16 %v53
    %v90 = vunpack.c.l.b16 %v54
    %v91 = vunpack.c.l.b16 %v55
    %v92 = vunpack.c.l.b16 %v56
    %v93 = vunpack.c.l.b16 %v57
    %v94 = vunpack.c.l.b16 %v58
    %v95 = vunpack.c.l.b16 %v59
    %v96 = vunpack.c.l.b16 %v60
    %v97 = vunpack.c.l.b16 %v61
    %v98 = vunpack.c.l.b16 %v62
    %v99 = vunpack.c.l.b16 %v63
    %v100 = vunpack.c.l.b16 %v64
    %v101 = vunpack.c.l.b16 %v65
    %v102 = vunpack.c.l.b16 %v66
    %v103 = vpack.c.b16 %v88, %v87
    %v104 = vpack.c.b16 %v90, %v89
    %v105 = vpack.c.b16 %v92, %v91
    %v106 = vpack.c.b16 %v94, %v93
    %v107 = vpack.c.b16 %v96, %v95
    %v108 = vpack.c.b16 %v98, %v97
    %v109 = vpack.c.b16 %v100, %v99
    %v110 = vpack.c.b16 %v102, %v101
    %119 = vmatpush.bf16.msra.mxu0 %v110
    %120 = vmatpush.bf16.msra.mxu0 %v109
    %121 = vmatpush.bf16.msra.mxu0 %v108
    %122 = vmatpush.bf16.msra.mxu0 %v107
    %123 = vmatpush.bf16.msra.mxu0 %v106
    %124 = vmatpush.bf16.msra.mxu0 %v105
    %125 = vmatpush.bf16.msra.mxu0 %v104
    %126 = vmatpush.bf16.msra.mxu0 %v103
    %127 = vmatmul.bf16.gmra.mxu0 %v70
    %v128 = vpop.f32.mrf.mxu0
    %v129 = vadd.f32 0.0, %v128
    %v130 = vpop.f32.mrf.mxu0
    %131 = vdwg.mxu0
    %132 = vmatpush.bf16.msra.mxu0 %v110
    %133 = vmatpush.bf16.msra.mxu0 %v109
    %134 = vmatpush.bf16.msra.mxu0 %v108
    %135 = vmatpush.bf16.msra.mxu0 %v107
    %136 = vmatpush.bf16.msra.mxu0 %v106
    %137 = vmatpush.bf16.msra.mxu0 %v105
    %138 = vmatpush.bf16.msra.mxu0 %v104
    %139 = vmatpush.bf16.msra.mxu0 %v103
    %140 = vmatmul.bf16.gmra.mxu0 %v67
    %v141 = vpop.f32.mrf.mxu0
    %v142 = vadd.f32 %v129, %v141
    %v143 = vpop.f32.mrf.mxu0
    %144 = vdwg.mxu0
    %v145 = vmul.f32 %v142, 0.03125
    %v146 = vsub.f32 %v50, %v145
    %v147 = vmul.f32 %v146, %v146
    %v148 = vpack.c.bf16 %v147, %v147
    %v149 = vunpack.c.l.bf16 %v148
    %v150 = vsub.f32 %v147, %v149
    %v151 = vpack.c.bf16 %v150, %v150
    %152 = vmatpush.bf16.msra.mxu0 %v110
    %153 = vmatpush.bf16.msra.mxu0 %v109
    %154 = vmatpush.bf16.msra.mxu0 %v108
    %155 = vmatpush.bf16.msra.mxu0 %v107
    %156 = vmatpush.bf16.msra.mxu0 %v106
    %157 = vmatpush.bf16.msra.mxu0 %v105
    %158 = vmatpush.bf16.msra.mxu0 %v104
    %159 = vmatpush.bf16.msra.mxu0 %v103
    %160 = vmatmul.bf16.gmra.mxu0 %v151
    %v161 = vpop.f32.mrf.mxu0
    %v162 = vadd.f32 0.0, %v161
    %v163 = vpop.f32.mrf.mxu0
    %164 = vdwg.mxu0
    %165 = vmatpush.bf16.msra.mxu0 %v110
    %166 = vmatpush.bf16.msra.mxu0 %v109
    %167 = vmatpush.bf16.msra.mxu0 %v108
    %168 = vmatpush.bf16.msra.mxu0 %v107
    %169 = vmatpush.bf16.msra.mxu0 %v106
    %170 = vmatpush.bf16.msra.mxu0 %v105
    %171 = vmatpush.bf16.msra.mxu0 %v104
    %172 = vmatpush.bf16.msra.mxu0 %v103
    %173 = vmatmul.bf16.gmra.mxu0 %v148
    %v174 = vpop.f32.mrf.mxu0
    %v175 = vadd.f32 %v162, %v174
    %v176 = vpop.f32.mrf.mxu0
    %177 = vdwg.mxu0
    %v178 = vmul.f32 %v175, 0.032258064
    %v179 = vadd.f32 %v178, 1e-05
    %v180 = vrsqrt.pop %v179
    %v181 = vmul.f32 %v180, %v179
    %v182 = vmul.f32 %v181, %v180
    %v183 = vmul.f32 0.5, %v182
    %v184 = vsub.f32 1.5, %v183
    %v185 = vmul.f32 %v180, %v184
    %vm186 = vweird.f32 %v179
    %vm187 = vweird.f32 %v180
    %vm188 = vmor %vm186, %vm187
    %v189 = vsel %vm188, %v180, %v185
    %s190 = sld [smem:[#allocation2]]
    %v191 = vstv %s190
    %v192 = vmul.f32 %v191, %v189
    %v193 = vmul.f32 %v146, %v192
    %s194 = sld [smem:[#allocation3]]
    %v195 = vstv %s194
    %v196 = vadd.f32 %v193, %v195
    %197 = vst [vmem:[#allocation9] sm:$0xff] %v196
    // Predicated region
    $region26: #{tpu_custom_call.1} parent=1 // pred_check
      _
    $region27: #{tpu_custom_call.1} parent=1 // pred_check_branch
      %199 = sbr.rel (0) target = $region29
    $region28: #{tpu_custom_call.1} parent=1 // pred_region
      %201 = vsyncadd [#allocation6], 0
      %s203 = sshll.u32 [#allocation9], 4
      %s204 = int_to_ptr.vmem [resolvable:$true] %s203
      %s205 = sshll.u32 %s4, 4
      %s206 = int_to_ptr.hbm [resolvable:$true] %s205
      %208 = dma.vmem_to_hbm [thread:$0]  %s204, 128, %s206, [#allocation6]
    $region29: #{tpu_custom_call.1} parent=1 // pred_fallthru
      _
    // Predicated region
    $region30: #{tpu_custom_call.1} parent=1 // pred_check
      _
    $region31: #{tpu_custom_call.1} parent=1 // pred_check_branch
      %210 = sbr.rel (0) target = $region33
    $region32: #{tpu_custom_call.1} parent=1 // pred_region
      %212 = dma.done [#allocation6], 128
    $region33: #{tpu_custom_call.1} parent=1 // pred_fallthru
      _
    %213 = vsyncpa [#allocation5], 1
    %214 = vsyncpa [#allocation8], 1
    %215 = vsyncpa [#allocation6], 1

</llo_original>
